<compile_context>
chip_gen: v5e
topology: v5e:2x2
jax: 0.10.0
libtpu: 0.0.40
codegen_flags: <defaults>
</compile_context>

<pallas_src>
import functools

import jax
import jax.numpy as jnp
from jax import lax
from jax.experimental import pallas as pl
from jax.experimental.pallas import tpu as pltpu

LANE = 128


def _round_up(n, m):
    return ((n + m - 1) // m) * m


def _default_bf16_hidden():
    """bf16 VPU path on v6e/v7x; keep f32 VPU arithmetic on v5e (no bf16 VPU)."""
    try:
        kind = jax.devices()[0].device_kind.lower()
    except Exception:
        return True
    return not ("v5 lite" in kind or "v5e" in kind or "v5lite" in kind)


def _select_batch_tile(batch, batch_tile):
    """Pick (tm, padded_rows). tm is a multiple of 8, <= batch_tile, and for
    large batches guarantees >= 2 grid steps (megacore sharding on v7x)."""
    rows = _round_up(max(batch, 1), 8)
    cap = max(8, _round_up(min(batch_tile, rows), 8))
    if rows <= 512:
        tm = min(rows, cap)                       # tiny batch: minimize grid steps
    else:
        tm = min(cap, _round_up((rows + 1) // 2, 8))   # >= 2 steps, <= batch_tile
    b_pad = _round_up(rows, tm)
    return tm, b_pad


def actor_kernel(x_ref, w1_ref, b1_ref, w2_ref, b2_ref, w3_ref, b3_ref, out_ref,
                 *, action_dim, packed, bf16_hidden):
    # layer 1: bf16 MXU matmul, f32 accumulate
    acc1 = jnp.dot(x_ref[...], w1_ref[...], preferred_element_type=jnp.float32)
    if bf16_hidden:
        # v6e/v7x: bias-add + ReLU natively in bf16 (halves VPU work / vreg pressure)
        h1 = jnp.maximum(acc1.astype(jnp.bfloat16) + b1_ref[...].astype(jnp.bfloat16), 0.0)
    else:
        # v5e: f32 VPU arithmetic, single cast for the next MXU matmul
        h1 = jnp.maximum(acc1 + b1_ref[...], 0.0).astype(jnp.bfloat16)

    # layer 2
    acc2 = jnp.dot(h1, w2_ref[...], preferred_element_type=jnp.float32)
    if bf16_hidden:
        h2 = jnp.maximum(acc2.astype(jnp.bfloat16) + b2_ref[...].astype(jnp.bfloat16), 0.0)
    else:
        h2 = jnp.maximum(acc2 + b2_ref[...], 0.0).astype(jnp.bfloat16)

    # output layer (lane-padded; if `packed`, lanes A:2A duplicate the real
    # output columns so logp can be stored contiguously with no lane shuffles)
    z = jnp.dot(h2, w3_ref[...], preferred_element_type=jnp.float32) + b3_ref[...]
    logits = jnp.tanh(z)
    apad = logits.shape[-1]

    # Categorical(logits=...) normalization. tanh bounds logits to [-1, 1], so
    # max-subtraction is unnecessary; only the first copy of the action lanes
    # contributes to the sum (padded / duplicated lanes are masked out).
    col = lax.broadcasted_iota(jnp.int32, logits.shape, 1)
    exps = jnp.where(col < action_dim, jnp.exp(logits), 0.0)
    lse = jnp.log(jnp.sum(exps, axis=-1, keepdims=True))

    if packed:
        # single 128-lane slab: lanes [0,A) = logits, [A,2A) = logp, rest junk
        out_ref[...] = logits - jnp.where(col < action_dim, 0.0, lse)
    else:
        # fallback for 2*A > 128: two lane-aligned regions
        out_ref[:, :apad] = logits
        out_ref[:, apad:] = logits - lse


def prepare_actor_params(params):
    """Hoisted, per-model (not per-call) parameter preparation:
    bf16 weight casts + lane-padded / duplicated output layer."""
    w1, b1, w2, b2, w3, b3 = params
    w1 = jnp.asarray(w1, jnp.float32)
    w2 = jnp.asarray(w2, jnp.float32)
    w3 = jnp.asarray(w3, jnp.float32)
    b1 = jnp.asarray(b1, jnp.float32).reshape(1, -1)
    b2 = jnp.asarray(b2, jnp.float32).reshape(1, -1)
    b3 = jnp.asarray(b3, jnp.float32).reshape(1, -1)

    A = w3.shape[1]
    a_pad = max(LANE, _round_up(A, LANE))
    packed = (2 * A) <= a_pad

    w3p = jnp.zeros((w3.shape[0], a_pad), jnp.float32).at[:, :A].set(w3)
    b3p = jnp.zeros((1, a_pad), jnp.float32).at[:, :A].set(b3)
    if packed:
        # duplicate the real output columns into lanes [A, 2A): the extra matmul
        # lanes are free (the tile is 128 wide anyway) and let the kernel emit
        # logits+logp as one contiguous, unmasked 128-lane store.
        w3p = w3p.at[:, A:2 * A].set(w3)
        b3p = b3p.at[:, A:2 * A].set(b3)

    return {
        "w1": w1.astype(jnp.bfloat16), "b1": b1,
        "w2": w2.astype(jnp.bfloat16), "b2": b2,
        "w3": w3p.astype(jnp.bfloat16), "b3": b3p,
        "action_dim": A, "a_pad": a_pad, "packed": packed,
    }


def discrete_stochastic_actor_forward(x, params, *, batch_tile=1024, bf16_hidden=None):
    """Returns (logits, log_probs) of the Categorical policy distribution.
    `params` may be the raw 6-tuple or the output of prepare_actor_params()."""
    if isinstance(params, (tuple, list)):
        params = prepare_actor_params(params)   # convenience path (prefer hoisting)
    if bf16_hidden is None:
        bf16_hidden = _default_bf16_hidden()

    B, S = x.shape
    A = params["action_dim"]
    a_pad = params["a_pad"]
    packed = params["packed"]
    H1 = params["w1"].shape[1]
    H2 = params["w2"].shape[1]
    out_w = a_pad if packed else 2 * a_pad

    tm, b_pad = _select_batch_tile(B, batch_tile)

    # cast to bf16 BEFORE padding (halves the pad copy); pad only when needed
    x_bf = x.astype(jnp.bfloat16)
    if b_pad != B:
        x_bf = jnp.zeros((b_pad, S), jnp.bfloat16).at[:B].set(x_bf)

    grid = (b_pad // tm,)
    kernel = functools.partial(actor_kernel, action_dim=A, packed=packed,
                               bf16_hidden=bf16_hidden)

    out = pl.pallas_call(
        kernel,
        out_shape=jax.ShapeDtypeStruct((b_pad, out_w), jnp.float32),
        grid=grid,
        in_specs=[
            pl.BlockSpec((tm, S), lambda i: (i, 0)),     # x: streamed per tile
            pl.BlockSpec((S, H1), lambda i: (0, 0)),     # weights/biases: constant
            pl.BlockSpec((1, H1), lambda i: (0, 0)),     # block index -> stay
            pl.BlockSpec((H1, H2), lambda i: (0, 0)),    # VMEM-resident across
            pl.BlockSpec((1, H2), lambda i: (0, 0)),     # grid steps
            pl.BlockSpec((H2, a_pad), lambda i: (0, 0)),
            pl.BlockSpec((1, a_pad), lambda i: (0, 0)),
        ],
        out_specs=pl.BlockSpec((tm, out_w), lambda i: (i, 0)),
        compiler_params=pltpu.CompilerParams(
            dimension_semantics=("parallel",),
            # only needed when tiles exceed 1024 rows (v5e's 16 MiB default)
            vmem_limit_bytes=(40 * 1024 * 1024) if tm > 1024 else None,
        ),
    )(x_bf, params["w1"], params["b1"], params["w2"], params["b2"],
      params["w3"], params["b3"])

    logits = out[:B, :A]
    logp_off = A if packed else a_pad
    logp = out[:B, logp_off:logp_off + A]
    return logits, logp


def init_params(key, state_dim, hidden_sizes, action_dim):
    """Deterministic init mirroring torch.nn.Linear default (U[-1/sqrt(fan_in), ...])."""
    sizes = (state_dim,) + tuple(hidden_sizes) + (action_dim,)
    params = []
    for i in range(len(sizes) - 1):
        fan_in, fan_out = sizes[i], sizes[i + 1]
        key, kw, kb = jax.random.split(key, 3)
        bound = 1.0 / jnp.sqrt(jnp.float32(fan_in))
        w = jax.random.uniform(kw, (fan_in, fan_out), jnp.float32, -bound, bound)
        b = jax.random.uniform(kb, (1, fan_out), jnp.float32, -bound, bound)
        params.extend([w, b])
    return tuple(params)


def reference_forward(x, params):
    w1, b1, w2, b2, w3, b3 = params
    h1 = jnp.maximum(x @ w1 + b1, 0.0)
    h2 = jnp.maximum(h1 @ w2 + b2, 0.0)
    logits = jnp.tanh(h2 @ w3 + b3)
    logp = logits - jax.scipy.special.logsumexp(logits, axis=-1, keepdims=True)
    return logits, logp


if __name__ == "__main__":
    key = jax.random.PRNGKey(0)
    k_x, k_x2, k_p = jax.random.split(key, 3)

    state_dim = 16
    hidden = (256, 256)    # approximator_hidden_sizes['mlp']
    action_dim = 8

    params = init_params(k_p, state_dim, hidden, action_dim)
    prepared = prepare_actor_params(params)   # hoisted: bf16 casts + padded W3/b3

    # small batch (single-tile path)
    x = jax.random.normal(k_x, (8, state_dim), jnp.float32)
    logits, logp = discrete_stochastic_actor_forward(x, prepared)
    logits = jax.block_until_ready(logits)
    logp = jax.block_until_ready(logp)

    ref_logits, ref_logp = reference_forward(x, params)
    # bf16 MXU operands vs f32 reference -> loose tolerance; logits are in [-1, 1]
    assert jnp.allclose(logits, ref_logits, atol=2e-2, rtol=2e-2), "logits mismatch"
    assert jnp.allclose(logp, ref_logp, atol=2e-2, rtol=2e-2), "log_prob mismatch"
    # sanity: the kernel's own distribution is exactly normalized (f32 outputs)
    assert jnp.allclose(jnp.sum(jnp.exp(logp), axis=-1), 1.0, atol=1e-5)

    # larger, non-tile-multiple batch (multi-step grid + row-padding path)
    x2 = jax.random.normal(k_x2, (520, state_dim), jnp.float32)
    logits2, logp2 = discrete_stochastic_actor_forward(x2, prepared)
    logits2 = jax.block_until_ready(logits2)
    logp2 = jax.block_until_ready(logp2)
    ref_logits2, ref_logp2 = reference_forward(x2, params)
    assert jnp.allclose(logits2, ref_logits2, atol=2e-2, rtol=2e-2), "tiled logits mismatch"
    assert jnp.allclose(logp2, ref_logp2, atol=2e-2, rtol=2e-2), "tiled log_prob mismatch"

    # TODO(synk): Categorical .sample() / .entropy() (random action draw) are left to
    # the host/JAX side; the kernel produces the distribution (logits + normalized
    # log-probs).
    print("KERNEL_OK")
</pallas_src>

<mosaic_0001>
module attributes {stable_mosaic.version = 11 : i64} {
  func.func @actor_kernel(%arg0: i32, %arg1: memref<8x16xbf16, #tpu.memory_space<vmem>>, %arg2: memref<16x256xbf16, #tpu.memory_space<vmem>>, %arg3: memref<1x256xf32, #tpu.memory_space<vmem>>, %arg4: memref<256x256xbf16, #tpu.memory_space<vmem>>, %arg5: memref<1x256xf32, #tpu.memory_space<vmem>>, %arg6: memref<256x128xbf16, #tpu.memory_space<vmem>>, %arg7: memref<1x128xf32, #tpu.memory_space<vmem>>, %arg8: memref<8x128xf32, #tpu.memory_space<vmem>>) attributes {dimension_semantics = [#tpu.dimension_semantics<parallel>], iteration_bounds = array<i64: 1>, scalar_prefetch = 0 : i64, scratch_operands = 0 : i64, tpu.core_type = #tpu.core_type<tc>, window_params = [{transform_indices = @transform_0, window_bounds = array<i64: 8, 16>}, {pipeline_mode = #tpu.pipeline_mode<synchronous>, transform_indices = @transform_1, window_bounds = array<i64: 16, 256>}, {pipeline_mode = #tpu.pipeline_mode<synchronous>, transform_indices = @transform_2, window_bounds = array<i64: 1, 256>}, {pipeline_mode = #tpu.pipeline_mode<synchronous>, transform_indices = @transform_3, window_bounds = array<i64: 256, 256>}, {pipeline_mode = #tpu.pipeline_mode<synchronous>, transform_indices = @transform_4, window_bounds = array<i64: 1, 256>}, {pipeline_mode = #tpu.pipeline_mode<synchronous>, transform_indices = @transform_5, window_bounds = array<i64: 256, 128>}, {pipeline_mode = #tpu.pipeline_mode<synchronous>, transform_indices = @transform_6, window_bounds = array<i64: 1, 128>}, {transform_indices = @transform_7, window_bounds = array<i64: 8, 128>}]} {
    %c0 = arith.constant 0 : index
    %c0_0 = arith.constant 0 : index
    %0 = vector.load %arg1[%c0, %c0_0] : memref<8x16xbf16, #tpu.memory_space<vmem>>, vector<8x16xbf16>
    %c0_1 = arith.constant 0 : index
    %c0_2 = arith.constant 0 : index
    %1 = vector.load %arg2[%c0_1, %c0_2] : memref<16x256xbf16, #tpu.memory_space<vmem>>, vector<16x256xbf16>
    %cst = arith.constant dense<0.000000e+00> : vector<8x256xf32>
    %2 = tpu.matmul %0, %1, %cst {dimension_numbers = #tpu.dot_dimension_numbers<[1], [0], [0], [1], [0, 0, 1, 1], [], []>} : vector<8x16xbf16>, vector<16x256xbf16>, vector<8x256xf32> -> vector<8x256xf32>
    %3 = arith.truncf %2 : vector<8x256xf32> to vector<8x256xbf16>
    %c0_3 = arith.constant 0 : index
    %c0_4 = arith.constant 0 : index
    %4 = vector.load %arg3[%c0_3, %c0_4] : memref<1x256xf32, #tpu.memory_space<vmem>>, vector<1x256xf32>
    %5 = arith.truncf %4 : vector<1x256xf32> to vector<1x256xbf16>
    %6 = vector.broadcast %5 : vector<1x256xbf16> to vector<8x256xbf16>
    %7 = arith.addf %3, %6 : vector<8x256xbf16>
    %cst_5 = arith.constant 0.000000e+00 : bf16
    %8 = vector.broadcast %cst_5 : bf16 to vector<8x256xbf16>
    %9 = arith.maximumf %7, %8 : vector<8x256xbf16>
    %c0_6 = arith.constant 0 : index
    %c0_7 = arith.constant 0 : index
    %10 = vector.load %arg4[%c0_6, %c0_7] : memref<256x256xbf16, #tpu.memory_space<vmem>>, vector<256x256xbf16>
    %cst_8 = arith.constant dense<0.000000e+00> : vector<8x256xf32>
    %11 = tpu.matmul %9, %10, %cst_8 {dimension_numbers = #tpu.dot_dimension_numbers<[1], [0], [0], [1], [0, 0, 1, 1], [], []>} : vector<8x256xbf16>, vector<256x256xbf16>, vector<8x256xf32> -> vector<8x256xf32>
    %12 = arith.truncf %11 : vector<8x256xf32> to vector<8x256xbf16>
    %c0_9 = arith.constant 0 : index
    %c0_10 = arith.constant 0 : index
    %13 = vector.load %arg5[%c0_9, %c0_10] : memref<1x256xf32, #tpu.memory_space<vmem>>, vector<1x256xf32>
    %14 = arith.truncf %13 : vector<1x256xf32> to vector<1x256xbf16>
    %15 = vector.broadcast %14 : vector<1x256xbf16> to vector<8x256xbf16>
    %16 = arith.addf %12, %15 : vector<8x256xbf16>
    %cst_11 = arith.constant 0.000000e+00 : bf16
    %17 = vector.broadcast %cst_11 : bf16 to vector<8x256xbf16>
    %18 = arith.maximumf %16, %17 : vector<8x256xbf16>
    %c0_12 = arith.constant 0 : index
    %c0_13 = arith.constant 0 : index
    %19 = vector.load %arg6[%c0_12, %c0_13] : memref<256x128xbf16, #tpu.memory_space<vmem>>, vector<256x128xbf16>
    %cst_14 = arith.constant dense<0.000000e+00> : vector<8x128xf32>
    %20 = tpu.matmul %18, %19, %cst_14 {dimension_numbers = #tpu.dot_dimension_numbers<[1], [0], [0], [1], [0, 0, 1, 1], [], []>} : vector<8x256xbf16>, vector<256x128xbf16>, vector<8x128xf32> -> vector<8x128xf32>
    %c0_15 = arith.constant 0 : index
    %c0_16 = arith.constant 0 : index
    %21 = vector.load %arg7[%c0_15, %c0_16] : memref<1x128xf32, #tpu.memory_space<vmem>>, vector<1x128xf32>
    %22 = vector.broadcast %21 : vector<1x128xf32> to vector<8x128xf32>
    %23 = arith.addf %20, %22 : vector<8x128xf32>
    %24 = math.tanh %23 : vector<8x128xf32>
    %25 = tpu.iota {dimensions = array<i32: 1>} : vector<8x128xi32>
    %c8_i32 = arith.constant 8 : i32
    %26 = vector.broadcast %c8_i32 : i32 to vector<8x128xi32>
    %27 = arith.cmpi slt, %25, %26 : vector<8x128xi32>
    %28 = math.exp %24 : vector<8x128xf32>
    %cst_17 = arith.constant 0.000000e+00 : f32
    %29 = vector.broadcast %cst_17 : f32 to vector<8x128xf32>
    %30 = arith.select %27, %28, %29 : vector<8x128xi1>, vector<8x128xf32>
    %cst_18 = arith.constant dense<0.000000e+00> : vector<8xf32>
    %31 = vector.multi_reduction <add>, %30, %cst_18 [1] : vector<8x128xf32> to vector<8xf32>
    %32 = vector.shape_cast %31 : vector<8xf32> to vector<8x1xf32>
    %33 = math.log %32 : vector<8x1xf32>
    %c8_i32_19 = arith.constant 8 : i32
    %34 = vector.broadcast %c8_i32_19 : i32 to vector<8x128xi32>
    %35 = arith.cmpi slt, %25, %34 : vector<8x128xi32>
    %cst_20 = arith.constant 0.000000e+00 : f32
    %36 = vector.broadcast %cst_20 : f32 to vector<8x128xf32>
    %37 = vector.shape_cast %33 : vector<8x1xf32> to vector<8x1xf32>
    %38 = vector.broadcast %37 : vector<8x1xf32> to vector<8x128xf32>
    %39 = arith.select %35, %36, %38 : vector<8x128xi1>, vector<8x128xf32>
    %40 = arith.subf %24, %39 : vector<8x128xf32>
    %c0_21 = arith.constant 0 : index
    %c0_22 = arith.constant 0 : index
    %41 = vector.load %arg8[%c0_21, %c0_22] : memref<8x128xf32, #tpu.memory_space<vmem>>, vector<8x128xf32>
    tpu.vector_store %arg8[%c0_21, %c0_22], %40 {strides = array<i32>} : memref<8x128xf32, #tpu.memory_space<vmem>>, vector<8x128xf32>,
    return
  }
  func.func @transform_0(%arg0: i32) -> (i32, i32) {
    %c0_i32 = arith.constant 0 : i32
    %c0_i32_0 = arith.constant 0 : i32
    return %arg0, %c0_i32 : i32, i32
  }
  func.func @transform_1(%arg0: i32) -> (i32, i32) {
    %c0_i32 = arith.constant 0 : i32
    %c0_i32_0 = arith.constant 0 : i32
    %c0_i32_1 = arith.constant 0 : i32
    return %c0_i32, %c0_i32_0 : i32, i32
  }
  func.func @transform_2(%arg0: i32) -> (i32, i32) {
    %c0_i32 = arith.constant 0 : i32
    %c0_i32_0 = arith.constant 0 : i32
    %c0_i32_1 = arith.constant 0 : i32
    return %c0_i32, %c0_i32_0 : i32, i32
  }
  func.func @transform_3(%arg0: i32) -> (i32, i32) {
    %c0_i32 = arith.constant 0 : i32
    %c0_i32_0 = arith.constant 0 : i32
    %c0_i32_1 = arith.constant 0 : i32
    return %c0_i32, %c0_i32_0 : i32, i32
  }
  func.func @transform_4(%arg0: i32) -> (i32, i32) {
    %c0_i32 = arith.constant 0 : i32
    %c0_i32_0 = arith.constant 0 : i32
    %c0_i32_1 = arith.constant 0 : i32
    return %c0_i32, %c0_i32_0 : i32, i32
  }
  func.func @transform_5(%arg0: i32) -> (i32, i32) {
    %c0_i32 = arith.constant 0 : i32
    %c0_i32_0 = arith.constant 0 : i32
    %c0_i32_1 = arith.constant 0 : i32
    return %c0_i32, %c0_i32_0 : i32, i32
  }
  func.func @transform_6(%arg0: i32) -> (i32, i32) {
    %c0_i32 = arith.constant 0 : i32
    %c0_i32_0 = arith.constant 0 : i32
    %c0_i32_1 = arith.constant 0 : i32
    return %c0_i32, %c0_i32_0 : i32, i32
  }
  func.func @transform_7(%arg0: i32) -> (i32, i32) {
    %c0_i32 = arith.constant 0 : i32
    %c0_i32_0 = arith.constant 0 : i32
    return %arg0, %c0_i32 : i32, i32
  }
}

</mosaic_0001>

<llo_original>
// kernel: tpu_custom_call.1
$region0: #{tpu_custom_call.1}
  #allocation0 [shape = 'u32[]', space=smem, size = 0x4, offset = 0x4, fixed_abs, tag = 'smem constant byte address 0x4 - core index']
  #allocation1 [shape = 'u32[72,128]{1,0:T(1,128)}', space=vmem, size = 0x9000, scoped, tag = 'internal scratch']
  %s0 = inlined_call_operand.hbm [shape: bf16[8,16], index: 0, kind: input, shape index: {}]
  %s1 = inlined_call_operand.hbm [shape: bf16[16,256], index: 1, kind: input, shape index: {}]
  %s2 = inlined_call_operand.hbm [shape: f32[1,256], index: 2, kind: input, shape index: {}]
  %s3 = inlined_call_operand.hbm [shape: bf16[256,256], index: 3, kind: input, shape index: {}]
  %s4 = inlined_call_operand.vmem [shape: f32[1,256], index: 4, kind: input, shape index: {}]
  %s5 = inlined_call_operand.hbm [shape: bf16[256,128], index: 5, kind: input, shape index: {}]
  %s6 = inlined_call_operand.vmem [shape: f32[1,128], index: 6, kind: input, shape index: {}]
  %s7 = inlined_call_operand.hbm [shape: f32[8,128], index: 7, kind: output, shape index: {}]
  %s8 = sld [smem:[#allocation0]]
  $region58: #{tpu_custom_call.1} parent=0
    _
  %s10 = ssub.s32 1, %s8
  %s11 = scalar_select 0, %s10, %s8
  $region1: #{tpu_custom_call.1} parent=0
    #allocation2 [shape = 'u8[2048]{0}', space=vmem, size = 0x800, scoped, tag = 'input window, operand 0, single buffered']
    #allocation3 [shape = 's32[1]{0}', space=sflag, size = 0x4, scoped, tag = 'scoped memory for tpu_custom_call.1']
    #allocation4 [shape = 's32[1]{0}', space=sflag, size = 0x4, scoped, tag = 'scoped memory for tpu_custom_call.1']
    #allocation5 [shape = 'u8[8192]{0}', space=vmem, size = 0x2000, scoped, tag = 'input window, operand 1, single buffered']
    #allocation6 [shape = 's32[1]{0}', space=sflag, size = 0x4, scoped, tag = 'scoped memory for tpu_custom_call.1']
    #allocation7 [shape = 'u8[1024]{0}', space=vmem, size = 0x400, scoped, tag = 'input window, operand 2, single buffered']
    #allocation8 [shape = 'u8[131072]{0}', space=vmem, size = 0x20000, scoped, tag = 'input window, operand 3, single buffered']
    #allocation9 [shape = 's32[1]{0}', space=sflag, size = 0x4, scoped, tag = 'scoped memory for tpu_custom_call.1']
    #allocation10 [shape = 'u8[65536]{0}', space=vmem, size = 0x10000, scoped, tag = 'input window, operand 5, single buffered']
    #allocation11 [shape = 'u8[4096]{0}', space=vmem, size = 0x1000, scoped, tag = 'output window, operand 0, single buffered']
    %12 = vsyncpa [#allocation3], 0
    %13 = vsyncpa [#allocation6], 0
    %14 = vsyncpa [#allocation9], 0
    %15 = vsyncpa [#allocation4], 0
    // Predicated region
    $region2: #{tpu_custom_call.1} parent=1 // pred_check
      _
    $region3: #{tpu_custom_call.1} parent=1 // pred_check_branch
      %17 = sbr.rel (0) target = $region5
    $region4: #{tpu_custom_call.1} parent=1 // pred_region
      %19 = vsyncadd [#allocation3], 0
      %s21 = sshll.u32 %s0, 4
      %s22 = int_to_ptr.hbm [resolvable:$true] %s21
      %s23 = sshll.u32 [#allocation2], 4
      %s24 = int_to_ptr.vmem [resolvable:$true] %s23
      %26 = dma.hbm_to_vmem [thread:$0]  %s22, 64, %s24, [#allocation3]
    $region5: #{tpu_custom_call.1} parent=1 // pred_fallthru
      _
    // Predicated region
    $region6: #{tpu_custom_call.1} parent=1 // pred_check
      _
    $region7: #{tpu_custom_call.1} parent=1 // pred_check_branch
      %28 = sbr.rel (0) target = $region9
    $region8: #{tpu_custom_call.1} parent=1 // pred_region
      %30 = vsyncadd [#allocation6], 0
      %s31 = sshll.u32 %s1, 4
      %s32 = int_to_ptr.hbm [resolvable:$true] %s31
      %s33 = sshll.u32 [#allocation5], 4
      %s34 = int_to_ptr.vmem [resolvable:$true] %s33
      %39 = dma.hbm_to_vmem [thread:$0]  %s32, 256, %s34, [#allocation6], 128, 128, 8
    $region9: #{tpu_custom_call.1} parent=1 // pred_fallthru
      _
    // Predicated region
    $region10: #{tpu_custom_call.1} parent=1 // pred_check
      _
    $region11: #{tpu_custom_call.1} parent=1 // pred_check_branch
      %41 = sbr.rel (0) target = $region13
    $region12: #{tpu_custom_call.1} parent=1 // pred_region
      %43 = vsyncadd [#allocation6], 0
      %s45 = sshll.u32 %s2, 4
      %s46 = int_to_ptr.hbm [resolvable:$true] %s45
      %s47 = sshll.u32 [#allocation7], 4
      %s48 = int_to_ptr.vmem [resolvable:$true] %s47
      %50 = dma.hbm_to_vmem [thread:$0]  %s46, 32, %s48, [#allocation6]
    $region13: #{tpu_custom_call.1} parent=1 // pred_fallthru
      _
    // Predicated region
    $region14: #{tpu_custom_call.1} parent=1 // pred_check
      _
    $region15: #{tpu_custom_call.1} parent=1 // pred_check_branch
      %52 = sbr.rel (0) target = $region17
    $region16: #{tpu_custom_call.1} parent=1 // pred_region
      %54 = vsyncadd [#allocation9], 0
      %s55 = sshll.u32 %s3, 4
      %s56 = int_to_ptr.hbm [resolvable:$true] %s55
      %s57 = sshll.u32 [#allocation8], 4
      %s58 = int_to_ptr.vmem [resolvable:$true] %s57
      %63 = dma.hbm_to_vmem [thread:$0]  %s56, 4096, %s58, [#allocation9], 128, 128, 8
    $region17: #{tpu_custom_call.1} parent=1 // pred_fallthru
      _
    // Predicated region
    $region18: #{tpu_custom_call.1} parent=1 // pred_check
      _
    $region19: #{tpu_custom_call.1} parent=1 // pred_check_branch
      %65 = sbr.rel (0) target = $region21
    $region20: #{tpu_custom_call.1} parent=1 // pred_region
      _
    $region21: #{tpu_custom_call.1} parent=1 // pred_fallthru
      _
    // Predicated region
    $region22: #{tpu_custom_call.1} parent=1 // pred_check
      _
    $region23: #{tpu_custom_call.1} parent=1 // pred_check_branch
      %67 = sbr.rel (0) target = $region25
    $region24: #{tpu_custom_call.1} parent=1 // pred_region
      %69 = vsyncadd [#allocation9], 0
      %s70 = sshll.u32 %s5, 4
      %s71 = int_to_ptr.hbm [resolvable:$true] %s70
      %s72 = sshll.u32 [#allocation10], 4
      %s73 = int_to_ptr.vmem [resolvable:$true] %s72
      %78 = dma.hbm_to_vmem [thread:$0]  %s71, 2048, %s73, [#allocation9], 64, 64, 4
    $region25: #{tpu_custom_call.1} parent=1 // pred_fallthru
      _
    // Predicated region
    $region26: #{tpu_custom_call.1} parent=1 // pred_check
      _
    $region27: #{tpu_custom_call.1} parent=1 // pred_check_branch
      %80 = sbr.rel (0) target = $region29
    $region28: #{tpu_custom_call.1} parent=1 // pred_region
      _
    $region29: #{tpu_custom_call.1} parent=1 // pred_fallthru
      _
    // Predicated region
    $region30: #{tpu_custom_call.1} parent=1 // pred_check
      _
    $region31: #{tpu_custom_call.1} parent=1 // pred_check_branch
      %82 = sbr.rel (0) target = $region33
    $region32: #{tpu_custom_call.1} parent=1 // pred_region
      %84 = dma.done [#allocation3], 64
    $region33: #{tpu_custom_call.1} parent=1 // pred_fallthru
      _
    // Predicated region
    $region34: #{tpu_custom_call.1} parent=1 // pred_check
      _
    $region35: #{tpu_custom_call.1} parent=1 // pred_check_branch
      %86 = sbr.rel (0) target = $region37
    $region36: #{tpu_custom_call.1} parent=1 // pred_region
      %88 = dma.done [#allocation6], 256
    $region37: #{tpu_custom_call.1} parent=1 // pred_fallthru
      _
    // Predicated region
    $region38: #{tpu_custom_call.1} parent=1 // pred_check
      _
    $region39: #{tpu_custom_call.1} parent=1 // pred_check_branch
      %90 = sbr.rel (0) target = $region41
    $region40: #{tpu_custom_call.1} parent=1 // pred_region
      %92 = dma.done [#allocation6], 32
    $region41: #{tpu_custom_call.1} parent=1 // pred_fallthru
      _
    // Predicated region
    $region42: #{tpu_custom_call.1} parent=1 // pred_check
      _
    $region43: #{tpu_custom_call.1} parent=1 // pred_check_branch
      %94 = sbr.rel (0) target = $region45
    $region44: #{tpu_custom_call.1} parent=1 // pred_region
      %96 = dma.done [#allocation9], 4096
    $region45: #{tpu_custom_call.1} parent=1 // pred_fallthru
      _
    // Predicated region
    $region46: #{tpu_custom_call.1} parent=1 // pred_check
      _
    $region47: #{tpu_custom_call.1} parent=1 // pred_check_branch
      %98 = sbr.rel (0) target = $region49
    $region48: #{tpu_custom_call.1} parent=1 // pred_region
      %100 = dma.done [#allocation9], 2048
    $region49: #{tpu_custom_call.1} parent=1 // pred_fallthru
      _
    %v102 = vld [vmem:[#allocation2] sm:$0xf]
    %v103 = vld [vmem:[#allocation5] sm:$0xff]
    %v104 = vld [vmem:[#allocation5 + $0x8] sm:$0xff]
    %v107 = vunpack.c.l.b16 %v103
    %v108 = vunpack.c.h.b16 %v103
    %v109 = vunpack.c.l.b16 %v104
    %v110 = vunpack.c.h.b16 %v104
    %v111 = vpack.c.b16 %v109, %v107
    %v112 = vpack.c.b16 %v110, %v108
    %vm115 = vcmask 130048
    %v117 = vsel %vm115, %v102, 0
    %119 = vmatpush.bf16.msra.mxu0 0
    %120 = vmatpush.bf16.msra.mxu0 0
    %121 = vmatpush.bf16.msra.mxu0 0
    %122 = vmatpush.bf16.msra.mxu0 0
    %123 = vmatpush.bf16.msra.mxu0 0
    %124 = vmatpush.bf16.msra.mxu0 0
    %125 = vmatpush.bf16.msra.mxu0 0
    %126 = vmatpush.bf16.msra.mxu0 %v111
    %127 = vmatmul.bf16.gmra.mxu0 %v117
    %v128 = vpop.f32.mrf.mxu0
    %v129 = vadd.f32 0.0, %v128
    %v130 = vpop.f32.mrf.mxu0
    %131 = vdwg.mxu0
    %132 = vmatpush.bf16.msra.mxu0 0
    %133 = vmatpush.bf16.msra.mxu0 0
    %134 = vmatpush.bf16.msra.mxu0 0
    %135 = vmatpush.bf16.msra.mxu0 0
    %136 = vmatpush.bf16.msra.mxu0 0
    %137 = vmatpush.bf16.msra.mxu0 0
    %138 = vmatpush.bf16.msra.mxu0 0
    %139 = vmatpush.bf16.msra.mxu0 %v112
    %140 = vmatmul.bf16.gmra.mxu0 %v117
    %v141 = vpop.f32.mrf.mxu0
    %v142 = vadd.f32 0.0, %v141
    %v143 = vpop.f32.mrf.mxu0
    %144 = vdwg.mxu0
    %v145 = vpack.c.bf16 %v142, %v129
    %v146 = vld [vmem:[#allocation7] sm:$0x3]
    %v148 = vperm.slane %v146, 0
    %v149 = vperm.slane %v146, 1
    %v152 = vpack.c.bf16 %v149, %v148
    %v154 = vunpack.c.l.b16 %v152
    %v155 = vunpack.c.h.b16 %v152
    %v156 = vpack.c.b16 %v154, %v154
    %v157 = vpack.c.b16 %v155, %v155
    %v159 = vpack.i.b16 %v156, %v156
    %v161 = vperm.slane %v159, 0
    %v163 = vpack.i.b16 %v157, %v157
    %v165 = vperm.slane %v163, 0
    %v166 = vunpack.c.l.bf16 %v145
    %v167 = vunpack.c.h.bf16 %v145
    %v168 = vunpack.c.l.bf16 %v161
    %v169 = vunpack.c.l.bf16 %v165
    %v170 = vadd.f32 %v166, %v168
    %v171 = vadd.f32 %v167, %v169
    %v172 = vpack.c.bf16 %v171, %v170
    %v173 = vunpack.c.l.bf16 %v172
    %v174 = vunpack.c.h.bf16 %v172
    %v175 = vmax.f32 %v173, 0.0
    %v176 = vmax.f32 %v174, 0.0
    %v177 = vpack.c.bf16 %v175, %v175
    %v178 = vpack.c.bf16 %v176, %v176
    %v179 = vld [vmem:[#allocation8] sm:$0xff]
    %v180 = vld [vmem:[#allocation8 + $0x8] sm:$0xff]
    %v181 = vld [vmem:[#allocation8 + $0x10] sm:$0xff]
    %v182 = vld [vmem:[#allocation8 + $0x18] sm:$0xff]
    %v183 = vld [vmem:[#allocation8 + $0x20] sm:$0xff]
    %v184 = vld [vmem:[#allocation8 + $0x28] sm:$0xff]
    %v185 = vld [vmem:[#allocation8 + $0x30] sm:$0xff]
    %v186 = vld [vmem:[#allocation8 + $0x38] sm:$0xff]
    %v187 = vld [vmem:[#allocation8 + $0x40] sm:$0xff]
    %v188 = vld [vmem:[#allocation8 + $0x48] sm:$0xff]
    %v189 = vld [vmem:[#allocation8 + $0x50] sm:$0xff]
    %v190 = vld [vmem:[#allocation8 + $0x58] sm:$0xff]
    %v191 = vld [vmem:[#allocation8 + $0x60] sm:$0xff]
    %v192 = vld [vmem:[#allocation8 + $0x68] sm:$0xff]
    %v193 = vld [vmem:[#allocation8 + $0x70] sm:$0xff]
    %v194 = vld [vmem:[#allocation8 + $0x78] sm:$0xff]
    %v195 = vld [vmem:[#allocation8 + $0x80] sm:$0xff]
    %v196 = vld [vmem:[#allocation8 + $0x88] sm:$0xff]
    %v197 = vld [vmem:[#allocation8 + $0x90] sm:$0xff]
    %v198 = vld [vmem:[#allocation8 + $0x98] sm:$0xff]
    %v199 = vld [vmem:[#allocation8 + $0xa0] sm:$0xff]
    %v200 = vld [vmem:[#allocation8 + $0xa8] sm:$0xff]
    %v201 = vld [vmem:[#allocation8 + $0xb0] sm:$0xff]
    %v202 = vld [vmem:[#allocation8 + $0xb8] sm:$0xff]
    %v203 = vld [vmem:[#allocation8 + $0xc0] sm:$0xff]
    %v204 = vld [vmem:[#allocation8 + $0xc8] sm:$0xff]
    %v205 = vld [vmem:[#allocation8 + $0xd0] sm:$0xff]
    %v206 = vld [vmem:[#allocation8 + $0xd8] sm:$0xff]
    %v207 = vld [vmem:[#allocation8 + $0xe0] sm:$0xff]
    %v208 = vld [vmem:[#allocation8 + $0xe8] sm:$0xff]
    %v209 = vld [vmem:[#allocation8 + $0xf0] sm:$0xff]
    %v210 = vld [vmem:[#allocation8 + $0xf8] sm:$0xff]
    %v243 = vunpack.c.l.b16 %v179
    %v244 = vunpack.c.h.b16 %v179
    %v245 = vunpack.c.l.b16 %v180
    %v246 = vunpack.c.h.b16 %v180
    %v247 = vunpack.c.l.b16 %v181
    %v248 = vunpack.c.h.b16 %v181
    %v249 = vunpack.c.l.b16 %v182
    %v250 = vunpack.c.h.b16 %v182
    %v251 = vunpack.c.l.b16 %v183
    %v252 = vunpack.c.h.b16 %v183
    %v253 = vunpack.c.l.b16 %v184
    %v254 = vunpack.c.h.b16 %v184
    %v255 = vunpack.c.l.b16 %v185
    %v256 = vunpack.c.h.b16 %v185
    %v257 = vunpack.c.l.b16 %v186
    %v258 = vunpack.c.h.b16 %v186
    %v259 = vunpack.c.l.b16 %v187
    %v260 = vunpack.c.h.b16 %v187
    %v261 = vunpack.c.l.b16 %v188
    %v262 = vunpack.c.h.b16 %v188
    %v263 = vunpack.c.l.b16 %v189
    %v264 = vunpack.c.h.b16 %v189
    %v265 = vunpack.c.l.b16 %v190
    %v266 = vunpack.c.h.b16 %v190
    %v267 = vunpack.c.l.b16 %v191
    %v268 = vunpack.c.h.b16 %v191
    %v269 = vunpack.c.l.b16 %v192
    %v270 = vunpack.c.h.b16 %v192
    %v271 = vunpack.c.l.b16 %v193
    %v272 = vunpack.c.h.b16 %v193
    %v273 = vunpack.c.l.b16 %v194
    %v274 = vunpack.c.h.b16 %v194
    %v275 = vunpack.c.l.b16 %v195
    %v276 = vunpack.c.h.b16 %v195
    %v277 = vunpack.c.l.b16 %v196
    %v278 = vunpack.c.h.b16 %v196
    %v279 = vunpack.c.l.b16 %v197
    %v280 = vunpack.c.h.b16 %v197
    %v281 = vunpack.c.l.b16 %v198
    %v282 = vunpack.c.h.b16 %v198
    %v283 = vunpack.c.l.b16 %v199
    %v284 = vunpack.c.h.b16 %v199
    %v285 = vunpack.c.l.b16 %v200
    %v286 = vunpack.c.h.b16 %v200
    %v287 = vunpack.c.l.b16 %v201
    %v288 = vunpack.c.h.b16 %v201
    %v289 = vunpack.c.l.b16 %v202
    %v290 = vunpack.c.h.b16 %v202
    %v291 = vunpack.c.l.b16 %v203
    %v292 = vunpack.c.h.b16 %v203
    %v293 = vunpack.c.l.b16 %v204
    %v294 = vunpack.c.h.b16 %v204
    %v295 = vunpack.c.l.b16 %v205
    %v296 = vunpack.c.h.b16 %v205
    %v297 = vunpack.c.l.b16 %v206
    %v298 = vunpack.c.h.b16 %v206
    %v299 = vunpack.c.l.b16 %v207
    %v300 = vunpack.c.h.b16 %v207
    %v301 = vunpack.c.l.b16 %v208
    %v302 = vunpack.c.h.b16 %v208
    %v303 = vunpack.c.l.b16 %v209
    %v304 = vunpack.c.h.b16 %v209
    %v305 = vunpack.c.l.b16 %v210
    %v306 = vunpack.c.h.b16 %v210
    %v307 = vpack.c.b16 %v245, %v243
    %v308 = vpack.c.b16 %v246, %v244
    %v309 = vpack.c.b16 %v249, %v247
    %v310 = vpack.c.b16 %v250, %v248
    %v311 = vpack.c.b16 %v253, %v251
    %v312 = vpack.c.b16 %v254, %v252
    %v313 = vpack.c.b16 %v257, %v255
    %v314 = vpack.c.b16 %v258, %v256
    %v315 = vpack.c.b16 %v261, %v259
    %v316 = vpack.c.b16 %v262, %v260
    %v317 = vpack.c.b16 %v265, %v263
    %v318 = vpack.c.b16 %v266, %v264
    %v319 = vpack.c.b16 %v269, %v267
    %v320 = vpack.c.b16 %v270, %v268
    %v321 = vpack.c.b16 %v273, %v271
    %v322 = vpack.c.b16 %v274, %v272
    %v323 = vpack.c.b16 %v277, %v275
    %v324 = vpack.c.b16 %v278, %v276
    %v325 = vpack.c.b16 %v281, %v279
    %v326 = vpack.c.b16 %v282, %v280
    %v327 = vpack.c.b16 %v285, %v283
    %v328 = vpack.c.b16 %v286, %v284
    %v329 = vpack.c.b16 %v289, %v287
    %v330 = vpack.c.b16 %v290, %v288
    %v331 = vpack.c.b16 %v293, %v291
    %v332 = vpack.c.b16 %v294, %v292
    %v333 = vpack.c.b16 %v297, %v295
    %v334 = vpack.c.b16 %v298, %v296
    %v335 = vpack.c.b16 %v301, %v299
    %v336 = vpack.c.b16 %v302, %v300
    %v337 = vpack.c.b16 %v305, %v303
    %v338 = vpack.c.b16 %v306, %v304
    %371 = vmatpush.bf16.msra.mxu0 %v321
    %372 = vmatpush.bf16.msra.mxu0 %v319
    %373 = vmatpush.bf16.msra.mxu0 %v317
    %374 = vmatpush.bf16.msra.mxu0 %v315
    %375 = vmatpush.bf16.msra.mxu0 %v313
    %376 = vmatpush.bf16.msra.mxu0 %v311
    %377 = vmatpush.bf16.msra.mxu0 %v309
    %378 = vmatpush.bf16.msra.mxu0 %v307
    %379 = vmatmul.bf16.gmra.mxu0 %v177
    %v380 = vpop.f32.mrf.mxu0
    %v381 = vadd.f32 0.0, %v380
    %v382 = vpop.f32.mrf.mxu0
    %383 = vdwg.mxu0
    %384 = vmatpush.bf16.msra.mxu0 %v337
    %385 = vmatpush.bf16.msra.mxu0 %v335
    %386 = vmatpush.bf16.msra.mxu0 %v333
    %387 = vmatpush.bf16.msra.mxu0 %v331
    %388 = vmatpush.bf16.msra.mxu0 %v329
    %389 = vmatpush.bf16.msra.mxu0 %v327
    %390 = vmatpush.bf16.msra.mxu0 %v325
    %391 = vmatpush.bf16.msra.mxu0 %v323
    %392 = vmatmul.bf16.gmra.mxu0 %v178
    %v393 = vpop.f32.mrf.mxu0
    %v394 = vadd.f32 %v381, %v393
    %v395 = vpop.f32.mrf.mxu0
    %396 = vdwg.mxu0
    %397 = vmatpush.bf16.msra.mxu0 %v322
    %398 = vmatpush.bf16.msra.mxu0 %v320
    %399 = vmatpush.bf16.msra.mxu0 %v318
    %400 = vmatpush.bf16.msra.mxu0 %v316
    %401 = vmatpush.bf16.msra.mxu0 %v314
    %402 = vmatpush.bf16.msra.mxu0 %v312
    %403 = vmatpush.bf16.msra.mxu0 %v310
    %404 = vmatpush.bf16.msra.mxu0 %v308
    %405 = vmatmul.bf16.gmra.mxu0 %v177
    %v406 = vpop.f32.mrf.mxu0
    %v407 = vadd.f32 0.0, %v406
    %v408 = vpop.f32.mrf.mxu0
    %409 = vdwg.mxu0
    %410 = vmatpush.bf16.msra.mxu0 %v338
    %411 = vmatpush.bf16.msra.mxu0 %v336
    %412 = vmatpush.bf16.msra.mxu0 %v334
    %413 = vmatpush.bf16.msra.mxu0 %v332
    %414 = vmatpush.bf16.msra.mxu0 %v330
    %415 = vmatpush.bf16.msra.mxu0 %v328
    %416 = vmatpush.bf16.msra.mxu0 %v326
    %417 = vmatpush.bf16.msra.mxu0 %v324
    %418 = vmatmul.bf16.gmra.mxu0 %v178
    %v419 = vpop.f32.mrf.mxu0
    %v420 = vadd.f32 %v407, %v419
    %v421 = vpop.f32.mrf.mxu0
    %422 = vdwg.mxu0
    %v423 = vpack.c.bf16 %v420, %v394
    %v424 = vld [vmem:[%s4] sm:$0x3]
    %v426 = vperm.slane %v424, 0
    %v427 = vperm.slane %v424, 1
    %v430 = vpack.c.bf16 %v427, %v426
    %v432 = vunpack.c.l.b16 %v430
    %v433 = vunpack.c.h.b16 %v430
    %v434 = vpack.c.b16 %v432, %v432
    %v435 = vpack.c.b16 %v433, %v433
    %v437 = vpack.i.b16 %v434, %v434
    %v439 = vperm.slane %v437, 0
    %v441 = vpack.i.b16 %v435, %v435
    %v443 = vperm.slane %v441, 0
    %v444 = vunpack.c.l.bf16 %v423
    %v445 = vunpack.c.h.bf16 %v423
    %v446 = vunpack.c.l.bf16 %v439
    %v447 = vunpack.c.l.bf16 %v443
    %v448 = vadd.f32 %v444, %v446
    %v449 = vadd.f32 %v445, %v447
    %v450 = vpack.c.bf16 %v449, %v448
    %v451 = vunpack.c.l.bf16 %v450
    %v452 = vunpack.c.h.bf16 %v450
    %v453 = vmax.f32 %v451, 0.0
    %v454 = vmax.f32 %v452, 0.0
    %v455 = vpack.c.bf16 %v453, %v453
    %v456 = vpack.c.bf16 %v454, %v454
    %v457 = vld [vmem:[#allocation10] sm:$0xf]
    %v458 = vld [vmem:[#allocation10 + $0x4] sm:$0xf]
    %v459 = vld [vmem:[#allocation10 + $0x8] sm:$0xf]
    %v460 = vld [vmem:[#allocation10 + $0xc] sm:$0xf]
    %v461 = vld [vmem:[#allocation10 + $0x10] sm:$0xf]
    %v462 = vld [vmem:[#allocation10 + $0x14] sm:$0xf]
    %v463 = vld [vmem:[#allocation10 + $0x18] sm:$0xf]
    %v464 = vld [vmem:[#allocation10 + $0x1c] sm:$0xf]
    %v465 = vld [vmem:[#allocation10 + $0x20] sm:$0xf]
    %v466 = vld [vmem:[#allocation10 + $0x24] sm:$0xf]
    %v467 = vld [vmem:[#allocation10 + $0x28] sm:$0xf]
    %v468 = vld [vmem:[#allocation10 + $0x2c] sm:$0xf]
    %v469 = vld [vmem:[#allocation10 + $0x30] sm:$0xf]
    %v470 = vld [vmem:[#allocation10 + $0x34] sm:$0xf]
    %v471 = vld [vmem:[#allocation10 + $0x38] sm:$0xf]
    %v472 = vld [vmem:[#allocation10 + $0x3c] sm:$0xf]
    %v473 = vld [vmem:[#allocation10 + $0x40] sm:$0xf]
    %v474 = vld [vmem:[#allocation10 + $0x44] sm:$0xf]
    %v475 = vld [vmem:[#allocation10 + $0x48] sm:$0xf]
    %v476 = vld [vmem:[#allocation10 + $0x4c] sm:$0xf]
    %v477 = vld [vmem:[#allocation10 + $0x50] sm:$0xf]
    %v478 = vld [vmem:[#allocation10 + $0x54] sm:$0xf]
    %v479 = vld [vmem:[#allocation10 + $0x58] sm:$0xf]
    %v480 = vld [vmem:[#allocation10 + $0x5c] sm:$0xf]
    %v481 = vld [vmem:[#allocation10 + $0x60] sm:$0xf]
    %v482 = vld [vmem:[#allocation10 + $0x64] sm:$0xf]
    %v483 = vld [vmem:[#allocation10 + $0x68] sm:$0xf]
    %v484 = vld [vmem:[#allocation10 + $0x6c] sm:$0xf]
    %v485 = vld [vmem:[#allocation10 + $0x70] sm:$0xf]
    %v486 = vld [vmem:[#allocation10 + $0x74] sm:$0xf]
    %v487 = vld [vmem:[#allocation10 + $0x78] sm:$0xf]
    %v488 = vld [vmem:[#allocation10 + $0x7c] sm:$0xf]
    %v489 = vld [vmem:[%s6] sm:$0x1]
    %v491 = vperm.slane %v489, 0
    %v525 = vunpack.c.l.b16 %v457
    %v526 = vunpack.c.l.b16 %v458
    %v527 = vunpack.c.l.b16 %v459
    %v528 = vunpack.c.l.b16 %v460
    %v529 = vunpack.c.l.b16 %v461
    %v530 = vunpack.c.l.b16 %v462
    %v531 = vunpack.c.l.b16 %v463
    %v532 = vunpack.c.l.b16 %v464
    %v533 = vunpack.c.l.b16 %v465
    %v534 = vunpack.c.l.b16 %v466
    %v535 = vunpack.c.l.b16 %v467
    %v536 = vunpack.c.l.b16 %v468
    %v537 = vunpack.c.l.b16 %v469
    %v538 = vunpack.c.l.b16 %v470
    %v539 = vunpack.c.l.b16 %v471
    %v540 = vunpack.c.l.b16 %v472
    %v541 = vunpack.c.l.b16 %v473
    %v542 = vunpack.c.l.b16 %v474
    %v543 = vunpack.c.l.b16 %v475
    %v544 = vunpack.c.l.b16 %v476
    %v545 = vunpack.c.l.b16 %v477
    %v546 = vunpack.c.l.b16 %v478
    %v547 = vunpack.c.l.b16 %v479
    %v548 = vunpack.c.l.b16 %v480
    %v549 = vunpack.c.l.b16 %v481
    %v550 = vunpack.c.l.b16 %v482
    %v551 = vunpack.c.l.b16 %v483
    %v552 = vunpack.c.l.b16 %v484
    %v553 = vunpack.c.l.b16 %v485
    %v554 = vunpack.c.l.b16 %v486
    %v555 = vunpack.c.l.b16 %v487
    %v556 = vunpack.c.l.b16 %v488
    %v557 = vpack.c.b16 %v526, %v525
    %v558 = vpack.c.b16 %v528, %v527
    %v559 = vpack.c.b16 %v530, %v529
    %v560 = vpack.c.b16 %v532, %v531
    %v561 = vpack.c.b16 %v534, %v533
    %v562 = vpack.c.b16 %v536, %v535
    %v563 = vpack.c.b16 %v538, %v537
    %v564 = vpack.c.b16 %v540, %v539
    %v565 = vpack.c.b16 %v542, %v541
    %v566 = vpack.c.b16 %v544, %v543
    %v567 = vpack.c.b16 %v546, %v545
    %v568 = vpack.c.b16 %v548, %v547
    %v569 = vpack.c.b16 %v550, %v549
    %v570 = vpack.c.b16 %v552, %v551
    %v571 = vpack.c.b16 %v554, %v553
    %v572 = vpack.c.b16 %v556, %v555
    %589 = vmatpush.bf16.msra.mxu0 %v564
    %590 = vmatpush.bf16.msra.mxu0 %v563
    %591 = vmatpush.bf16.msra.mxu0 %v562
    %592 = vmatpush.bf16.msra.mxu0 %v561
    %593 = vmatpush.bf16.msra.mxu0 %v560
    %594 = vmatpush.bf16.msra.mxu0 %v559
    %595 = vmatpush.bf16.msra.mxu0 %v558
    %596 = vmatpush.bf16.msra.mxu0 %v557
    %597 = vmatmul.bf16.gmra.mxu0 %v455
    %v598 = vpop.f32.mrf.mxu0
    %v599 = vadd.f32 %v491, %v598
    %v600 = vpop.f32.mrf.mxu0
    %601 = vdwg.mxu0
    %602 = vmatpush.bf16.msra.mxu0 %v572
    %603 = vmatpush.bf16.msra.mxu0 %v571
    %604 = vmatpush.bf16.msra.mxu0 %v570
    %605 = vmatpush.bf16.msra.mxu0 %v569
    %606 = vmatpush.bf16.msra.mxu0 %v568
    %607 = vmatpush.bf16.msra.mxu0 %v567
    %608 = vmatpush.bf16.msra.mxu0 %v566
    %609 = vmatpush.bf16.msra.mxu0 %v565
    %610 = vmatmul.bf16.gmra.mxu0 %v456
    %v611 = vpop.f32.mrf.mxu0
    %v612 = vadd.f32 %v599, %v611
    %v613 = vpop.f32.mrf.mxu0
    %614 = vdwg.mxu0
    %v615 = vtanh.pop %v612
    %v616 = vlaneseq
    %v617 = vand.u32 %v616, 127
    %vm618 = vcmp.lt.s32.totalorder %v617, 8
    %v619 = vmul.f32 %v615, 1.442695
    %v620 = vpow.pop %v619
    %v621 = vsel %vm618, %v620, 0.0
    %622 = vadd.xlane.f32.xlu0 %v621
    %v623 = vpop.xlane.xlu0 %622
    %v624 = vlog2.pop %v623
    %v625 = vmul.f32 %v624, 0.6931472
    %v626 = vsel %vm618, 0.0, %v625
    %v627 = vsub.f32 %v615, %v626
    %628 = vst [vmem:[#allocation11] sm:$0xff] %v627
    // Predicated region
    $region50: #{tpu_custom_call.1} parent=1 // pred_check
      _
    $region51: #{tpu_custom_call.1} parent=1 // pred_check_branch
      %630 = sbr.rel (0) target = $region53
    $region52: #{tpu_custom_call.1} parent=1 // pred_region
      %632 = vsyncadd [#allocation4], 0
      %s634 = sshll.u32 [#allocation11], 4
      %s635 = int_to_ptr.vmem [resolvable:$true] %s634
      %s636 = sshll.u32 %s7, 4
      %s637 = int_to_ptr.hbm [resolvable:$true] %s636
      %639 = dma.vmem_to_hbm [thread:$0]  %s635, 128, %s637, [#allocation4]
    $region53: #{tpu_custom_call.1} parent=1 // pred_fallthru
      _
    // Predicated region
    $region54: #{tpu_custom_call.1} parent=1 // pred_check
      _
    $region55: #{tpu_custom_call.1} parent=1 // pred_check_branch
      %641 = sbr.rel (0) target = $region57
    $region56: #{tpu_custom_call.1} parent=1 // pred_region
      %643 = dma.done [#allocation4], 128
    $region57: #{tpu_custom_call.1} parent=1 // pred_fallthru
      _
    %644 = vsyncpa [#allocation3], 1
    %645 = vsyncpa [#allocation6], 1
    %646 = vsyncpa [#allocation9], 1
    %647 = vsyncpa [#allocation4], 1

</llo_original>
